<compile_context>
chip_gen: v5e
topology: v5e:2x2
jax: 0.10.0
libtpu: 0.0.40
codegen_flags: <defaults>
</compile_context>

<pallas_src>
import numpy as np
import jax
import jax.numpy as jnp
from jax import lax
from jax.experimental import pallas as pl
from jax.experimental.pallas import tpu as pltpu


def _make_resident_kernel(rows_per_step):
    """Gather R rows per grid step from a VMEM-resident table."""
    R = rows_per_step

    def kernel(idx_ref, table_ref, o_ref):
        # idx_ref : (Npad,) int32 in SMEM (scalar prefetch)
        # table_ref: (V, D) VMEM-resident embedding table
        # o_ref   : (R, D) output tile for this grid step
        base = pl.multiple_of(pl.program_id(0) * R, R)

        @pl.loop(0, R)
        def _(r):
            idx = idx_ref[base + r]
            o_ref[pl.ds(r, 1), :] = table_ref[pl.ds(idx, 1), :]

    return kernel


def _make_hbm_gather_kernel(rows_per_step, dma_window):
    """Gather R rows per grid step straight from HBM with W in-flight row DMAs."""
    R, W = rows_per_step, dma_window

    def kernel(idx_ref, table_hbm, o_ref, row_buf, sem):
        # idx_ref  : (Npad,) int32 in SMEM (scalar prefetch)
        # table_hbm: (V, D) table left in HBM (memory_space=pl.ANY)
        # o_ref    : (R, D) output tile
        # row_buf  : (R, D) VMEM scratch the row DMAs land in
        # sem      : (W,) DMA semaphores (round-robin slots)
        base = pl.multiple_of(pl.program_id(0) * R, R)

        def start(r, slot):
            idx = idx_ref[base + r]
            pltpu.make_async_copy(
                table_hbm.at[pl.ds(idx, 1), :],
                row_buf.at[pl.ds(r, 1), :],
                sem.at[slot],
            ).start()

        def wait(slot):
            # Dummy src/dst of the same (1, D) shape: the wait only needs the
            # transfer size to know how much to decrement the semaphore by.
            pltpu.make_async_copy(
                table_hbm.at[pl.ds(0, 1), :],
                row_buf.at[pl.ds(0, 1), :],
                sem.at[slot],
            ).wait()

        @pl.loop(0, W)              # prime the DMA window
        def _(r):
            start(r, r)

        @pl.loop(W, R)              # steady state: wait on a slot, then reuse it
        def _(r):
            slot = lax.rem(r, W)
            wait(slot)
            start(r, slot)

        @pl.loop(0, W)              # drain the remaining in-flight DMAs
        def _(s):
            wait(s)

        # One lane+sublane-dense full-tile store into the pipelined output block.
        o_ref[...] = row_buf[...]

    return kernel


def features_embedding(x, table, offsets, *, rows_per_step=256, dma_window=8,
                       resident_table_bytes=24 << 20):
    """x: (B, F) integer field indices; table: (V, D); offsets: (F,) -> (B, F, D)."""
    B, F = x.shape
    V, D = table.shape
    dtype = table.dtype
    itemsize = dtype.itemsize

    # PyTorch: x = x + offsets.unsqueeze(0); the gather is then a flat row lookup.
    flat_idx = (x.astype(jnp.int32) + offsets.astype(jnp.int32)[None, :]).reshape(-1)
    N = B * F

    # Rows per grid step: a multiple of the sublane packing (8 for f32, 16 for bf16),
    # big enough to amortize per-step overhead, no bigger than the (padded) problem.
    row_mult = max(8, 32 // itemsize)
    R = min(rows_per_step, pl.cdiv(N, row_mult) * row_mult)
    R = max(row_mult, (R // row_mult) * row_mult)
    n_steps = pl.cdiv(N, R)
    Npad = n_steps * R
    if Npad != N:
        flat_idx = jnp.pad(flat_idx, (0, Npad - N))   # pad with row 0 (always valid)

    out_block_bytes = R * D * itemsize
    table_bytes = V * D * itemsize
    resident = table_bytes <= resident_table_bytes

    if resident:
        kernel = _make_resident_kernel(R)
        # Constant index_map -> table DMA'd HBM->VMEM once, resident across the grid.
        in_specs = [pl.BlockSpec((V, D), lambda i, idx_ref: (0, 0))]
        scratch_shapes = []
        # Budget for possible double-buffering of the (constant) table block.
        vmem_need = 2 * table_bytes + 2 * out_block_bytes + (2 << 20)
    else:
        W = max(1, min(dma_window, R))
        kernel = _make_hbm_gather_kernel(R, W)
        in_specs = [pl.BlockSpec(memory_space=pl.ANY)]   # table stays in HBM
        scratch_shapes = [pltpu.VMEM((R, D), dtype), pltpu.SemaphoreType.DMA((W,))]
        vmem_need = 3 * out_block_bytes + (2 << 20)

    out = pl.pallas_call(
        kernel,
        out_shape=jax.ShapeDtypeStruct((Npad, D), dtype),
        grid_spec=pltpu.PrefetchScalarGridSpec(
            num_scalar_prefetch=1,            # flat_idx -> SMEM, feeds kernel + maps
            grid=(n_steps,),
            in_specs=in_specs,
            out_specs=pl.BlockSpec((R, D), lambda i, idx_ref: (i, 0)),
            scratch_shapes=scratch_shapes,
        ),
        compiler_params=pltpu.CompilerParams(
            # Output tiles are disjoint; no reduction axis.  (A CORE_PARALLEL
            # leading axis would guarantee the 2-TC split on v7x; kept simple here.)
            dimension_semantics=("parallel",),
            vmem_limit_bytes=int(min(max(vmem_need, 16 << 20), 56 << 20)),
        ),
    )(flat_idx, table)
    return out[:N].reshape(B, F, D)


def features_embedding_ref(x, table, offsets):
    """Pure-JAX reference mirroring the PyTorch forward."""
    idx = x.astype(jnp.int32) + offsets.astype(jnp.int32)[None, :]
    return table[idx]


if __name__ == "__main__":
    # Small demo shapes consistent with the module: 4 categorical fields,
    # batch of 8, embed_dim = 128 (lane-dense).
    field_dims = (5, 7, 9, 11)
    num_fields = len(field_dims)
    embed_dim = 128
    batch = 8
    vocab = int(sum(field_dims))

    key = jax.random.PRNGKey(0)
    k_table, k_idx = jax.random.split(key)

    # xavier_uniform_ on the (vocab, embed_dim) embedding weight.
    bound = (6.0 / (vocab + embed_dim)) ** 0.5
    table = jax.random.uniform(
        k_table, (vocab, embed_dim), jnp.float32, minval=-bound, maxval=bound
    )

    # offsets = (0, cumsum(field_dims)[:-1]) as in the PyTorch module.
    offsets = jnp.asarray((0, *np.cumsum(field_dims)[:-1]), dtype=jnp.int32)

    # Random per-field raw indices in [0, field_dims[f]).
    idx_keys = jax.random.split(k_idx, num_fields)
    cols = [
        jax.random.randint(idx_keys[f], (batch,), 0, field_dims[f], dtype=jnp.int32)
        for f in range(num_fields)
    ]
    x = jnp.stack(cols, axis=1)  # (B, F)

    ref = features_embedding_ref(x, table, offsets)

    # Fast path: table held resident in VMEM, gathered with dynamic VMEM slices.
    out_fast = jax.block_until_ready(features_embedding(x, table, offsets))
    assert out_fast.shape == (batch, num_fields, embed_dim)
    assert jnp.array_equal(out_fast, ref), "resident-table path mismatch vs reference"

    # Big-table path: force the manual HBM DMA gather (windowed in-flight row DMAs).
    out_hbm = jax.block_until_ready(
        features_embedding(x, table, offsets, resident_table_bytes=0)
    )
    assert jnp.array_equal(out_hbm, ref), "HBM-gather path mismatch vs reference"

    print("KERNEL_OK")
</pallas_src>

<mosaic_0001>
module attributes {stable_mosaic.version = 11 : i64} {
  func.func @kernel(%arg0: i32, %arg1: memref<32xi32, #tpu.memory_space<smem>>, %arg2: memref<32x128xf32, #tpu.memory_space<vmem>>, %arg3: memref<32x128xf32, #tpu.memory_space<vmem>>) attributes {dimension_semantics = [#tpu.dimension_semantics<parallel>], iteration_bounds = array<i64: 1>, scalar_prefetch = 1 : i64, scratch_operands = 0 : i64, tpu.core_type = #tpu.core_type<tc>, window_params = [{pipeline_mode = #tpu.pipeline_mode<synchronous>, transform_indices = @transform_0, window_bounds = array<i64: 32, 128>}, {transform_indices = @transform_1, window_bounds = array<i64: 32, 128>}]} {
    %c32_i32 = arith.constant 32 : i32
    %0 = arith.muli %arg0, %c32_i32 : i32
    %1 = tpu.assume_multiple %0, 32 : i32
    %c0_i32 = arith.constant 0 : i32
    %c32_i32_0 = arith.constant 32 : i32
    %2 = arith.addi %c0_i32, %c32_i32_0 : i32
    %c1_i32 = arith.constant 1 : i32
    scf.for %arg4 = %c0_i32 to %2 step %c1_i32  : i32 {
      %c1_i32_2 = arith.constant 1 : i32
      %3 = arith.muli %arg4, %c1_i32_2 : i32
      %c0_i32_3 = arith.constant 0 : i32
      %4 = arith.addi %c0_i32_3, %3 : i32
      %5 = arith.addi %1, %4 : i32
      %6 = arith.index_cast %5 : i32 to index
      %7 = memref.load %arg1[%6] : memref<32xi32, #tpu.memory_space<smem>>
      %8 = arith.index_cast %7 : i32 to index
      %c0 = arith.constant 0 : index
      %9 = vector.load %arg2[%8, %c0] : memref<32x128xf32, #tpu.memory_space<vmem>>, vector<1x128xf32>
      %10 = arith.index_cast %4 : i32 to index
      %c0_4 = arith.constant 0 : index
      %11 = vector.load %arg3[%10, %c0_4] : memref<32x128xf32, #tpu.memory_space<vmem>>, vector<1x128xf32>
      tpu.vector_store %arg3[%10, %c0_4], %9 {strides = array<i32>} : memref<32x128xf32, #tpu.memory_space<vmem>>, vector<1x128xf32>,
    }
    %c32_i32_1 = arith.constant 32 : i32
    return
  }
  func.func @transform_0(%arg0: i32, %arg1: memref<32xi32, #tpu.memory_space<smem>>) -> (i32, i32) {
    %c0_i32 = arith.constant 0 : i32
    %c0_i32_0 = arith.constant 0 : i32
    %c0_i32_1 = arith.constant 0 : i32
    return %c0_i32, %c0_i32_0 : i32, i32
  }
  func.func @transform_1(%arg0: i32, %arg1: memref<32xi32, #tpu.memory_space<smem>>) -> (i32, i32) {
    %c0_i32 = arith.constant 0 : i32
    %c0_i32_0 = arith.constant 0 : i32
    return %arg0, %c0_i32 : i32, i32
  }
}

</mosaic_0001>

<llo_original>
// kernel: tpu_custom_call.1
$region0: #{tpu_custom_call.1}
  #allocation0 [shape = 'u32[]', space=smem, size = 0x4, offset = 0x4, fixed_abs, tag = 'smem constant byte address 0x4 - core index']
  #allocation1 [shape = 'u32[72,128]{1,0:T(1,128)}', space=vmem, size = 0x9000, scoped, tag = 'internal scratch']
  #allocation2 [shape = 's32[1]{0}', space=sflag, size = 0x4, scoped, tag = 'scoped memory for tpu_custom_call.1']
  #allocation3 [shape = 'u8[512]{0}', space=smem, size = 0x200, scoped, tag = 'prefetched SMEM operand 0']
  %s0 = inlined_call_operand.hbm [shape: s32[32], index: 0, kind: input, shape index: {}]
  %s1 = inlined_call_operand.hbm [shape: f32[32,128], index: 1, kind: input, shape index: {}]
  %s2 = inlined_call_operand.hbm [shape: f32[32,128], index: 2, kind: output, shape index: {}]
  %s3 = sld [smem:[#allocation0]]
  $region25: #{tpu_custom_call.1} parent=0
    _
  %s5 = ssub.s32 1, %s3
  %s6 = scalar_select 0, %s5, %s3
  %s8 = sshll.u32 %s0, 4
  %s9 = int_to_ptr.hbm [resolvable:$true] %s8
  %11 = dma.hbm_to_smem %s9, 16, [#allocation3], [#allocation2]
  %13 = dma.done [#allocation2], 16
  %14 = sfence
  $region1: #{tpu_custom_call.1} parent=0
    #allocation4 [shape = 'u8[16384]{0}', space=vmem, size = 0x4000, scoped, tag = 'input window, operand 1, single buffered']
    #allocation5 [shape = 's32[1]{0}', space=sflag, size = 0x4, scoped, tag = 'scoped memory for tpu_custom_call.1']
    #allocation6 [shape = 's32[1]{0}', space=sflag, size = 0x4, scoped, tag = 'scoped memory for tpu_custom_call.1']
    #allocation7 [shape = 'u8[16384]{0}', space=vmem, size = 0x4000, scoped, tag = 'output window, operand 0, single buffered']
    %15 = vsyncpa [#allocation5], 0
    %16 = vsyncpa [#allocation6], 0
    // Predicated region
    $region2: #{tpu_custom_call.1} parent=1 // pred_check
      _
    $region3: #{tpu_custom_call.1} parent=1 // pred_check_branch
      %18 = sbr.rel (0) target = $region5
    $region4: #{tpu_custom_call.1} parent=1 // pred_region
      %20 = vsyncadd [#allocation5], 0
      %s21 = sshll.u32 %s1, 4
      %s22 = int_to_ptr.hbm [resolvable:$true] %s21
      %s23 = sshll.u32 [#allocation4], 4
      %s24 = int_to_ptr.vmem [resolvable:$true] %s23
      %29 = dma.hbm_to_vmem [thread:$0]  %s22, 512, %s24, [#allocation5], 128, 128, 8
    $region5: #{tpu_custom_call.1} parent=1 // pred_fallthru
      _
    // Predicated region
    $region6: #{tpu_custom_call.1} parent=1 // pred_check
      _
    $region7: #{tpu_custom_call.1} parent=1 // pred_check_branch
      %31 = sbr.rel (0) target = $region9
    $region8: #{tpu_custom_call.1} parent=1 // pred_region
      %33 = dma.done [#allocation5], 512
    $region9: #{tpu_custom_call.1} parent=1 // pred_fallthru
      _
    %s34 = smul.u32 0, 32
    loop: start=0, step=1, limit=32
    $region10: #{tpu_custom_call.1} parent=1 // loop_pre_header
      _
    $region11: #{tpu_custom_call.1} parent=1 // loop_header
      %s36 = sphi 0, %s40
      %p37 = scmp.ge.s32.totalorder %s36, 32
    $region12: #{tpu_custom_call.1} parent=1 // loop_header_branch
      %39 = sbr.rel (%p37) target = $region16
    $region13: #{tpu_custom_call.1} parent=1 // loop_body
      %s41 = sadd.s32 %s34, %s36
      %s42 = sld [smem:[#allocation3 + %s41]]
      %s43 = scalar_lea.vmem [#allocation4], %s42
      %v44 = vld [vmem:[%s43] sm:$0x1]
      %s45 = scalar_lea.vmem [#allocation7], %s36
      %46 = vst [vmem:[%s45] sm:$0x1] %v44
    $region14: #{tpu_custom_call.1} parent=1 // loop_footer
      %s40 = sadd.s32 1, %s36
    $region15: #{tpu_custom_call.1} parent=1 // loop_footer_branch
      %35 = sbr.rel target = $region11
    $region16: #{tpu_custom_call.1} parent=1 // loop_exit
      _
    // Predicated region
    $region17: #{tpu_custom_call.1} parent=1 // pred_check
      _
    $region18: #{tpu_custom_call.1} parent=1 // pred_check_branch
      %48 = sbr.rel (0) target = $region20
    $region19: #{tpu_custom_call.1} parent=1 // pred_region
      %50 = vsyncadd [#allocation6], 0
      %s51 = sshll.u32 [#allocation7], 4
      %s52 = int_to_ptr.vmem [resolvable:$true] %s51
      %s53 = sshll.u32 %s2, 4
      %s54 = int_to_ptr.hbm [resolvable:$true] %s53
      %59 = dma.vmem_to_hbm [thread:$0]  %s52, 512, %s54, [#allocation6], 128, 128, 8
    $region20: #{tpu_custom_call.1} parent=1 // pred_fallthru
      _
    // Predicated region
    $region21: #{tpu_custom_call.1} parent=1 // pred_check
      _
    $region22: #{tpu_custom_call.1} parent=1 // pred_check_branch
      %61 = sbr.rel (0) target = $region24
    $region23: #{tpu_custom_call.1} parent=1 // pred_region
      %63 = dma.done [#allocation6], 512
    $region24: #{tpu_custom_call.1} parent=1 // pred_fallthru
      _
    %64 = vsyncpa [#allocation5], 1
    %65 = vsyncpa [#allocation6], 1

</llo_original>
